<compile_context>
chip_gen: v7x
topology: tpu7x:2x2x1
jax: 0.10.0
libtpu: 0.0.40
codegen_flags: <defaults>
</compile_context>

<pallas_src>
import functools

import jax
import jax.numpy as jnp
import numpy as np
from jax.experimental import pallas as pl
from jax.experimental.pallas import tpu as pltpu


_VMEM = pl.BlockSpec(memory_space=pltpu.MemorySpace.VMEM)


def _round_up(x, m):
    return ((x + m - 1) // m) * m


def _mlp_eval_kernel(x_ref, w1t_ref, b1_ref, w2t_ref, b2_ref, out_ref):
    """out = (x @ W1t + b1) @ W2t + b2   (dropout = identity, eval mode)."""
    e = jnp.dot(x_ref[...], w1t_ref[...],
                preferred_element_type=jnp.float32) + b1_ref[...]
    out = jnp.dot(e, w2t_ref[...],
                  preferred_element_type=jnp.float32) + b2_ref[...]
    out_ref[...] = out.astype(out_ref.dtype)


def _mlp_train_kernel(x_ref, w1t_ref, b1_ref, w2t_ref, b2_ref, mask_ref, out_ref):
    """out = ((x @ W1t + b1) * mask) @ W2t + b2   (mask = keep / (1-p))."""
    e = jnp.dot(x_ref[...], w1t_ref[...],
                preferred_element_type=jnp.float32) + b1_ref[...]
    h = e * mask_ref[...]                      # fused dropout epilogue, stays in vregs
    out = jnp.dot(h, w2t_ref[...],
                  preferred_element_type=jnp.float32) + b2_ref[...]
    out_ref[...] = out.astype(out_ref.dtype)


@functools.partial(jax.jit, static_argnames=("d_out",))
def _forward_eval(x, w1t, b1r, w2t, b2r, *, d_out):
    B = x.shape[0]
    out_pad = w2t.shape[1]
    out = pl.pallas_call(
        _mlp_eval_kernel,
        out_shape=jax.ShapeDtypeStruct((B, out_pad), x.dtype),
        in_specs=[_VMEM] * 5,
        out_specs=_VMEM,
    )(x, w1t, b1r, w2t, b2r)
    return out[:, :d_out]


@functools.partial(jax.jit, static_argnames=("d_out", "p"))
def _forward_train(x, w1t, b1r, w2t, b2r, key, *, d_out, p):
    B = x.shape[0]
    hidden_pad = w1t.shape[1]
    out_pad = w2t.shape[1]
    keep = jax.random.bernoulli(key, 1.0 - p, (B, hidden_pad))
    mask = keep.astype(x.dtype) * (1.0 / (1.0 - p))    # inverted dropout scaling
    out = pl.pallas_call(
        _mlp_train_kernel,
        out_shape=jax.ShapeDtypeStruct((B, out_pad), x.dtype),
        in_specs=[_VMEM] * 6,
        out_specs=_VMEM,
    )(x, w1t, b1r, w2t, b2r, mask)
    return out[:, :d_out]


class SimpleModelPallas:
    """JAX/Pallas port of SimpleModel: forward(x) = fc2(dropout(fc1(x)))."""

    def __init__(self, input_dim, output_dim, hidden_dim=16, p=0.6, key=None):
        assert 0.0 <= p < 1.0, "dropout p must be in [0, 1)"
        if key is None:
            key = jax.random.PRNGKey(0)
        self.p = float(p)
        self.input_dim = int(input_dim)
        self.output_dim = int(output_dim)
        self.hidden_dim = int(hidden_dim)

        def linear_init(k, out_dim, in_dim):
            # Mimic nn.Linear default init: U(-1/sqrt(in), 1/sqrt(in))
            kw, kb = jax.random.split(k)
            bound = 1.0 / np.sqrt(in_dim)
            w = jax.random.uniform(kw, (out_dim, in_dim), jnp.float32, -bound, bound)
            b = jax.random.uniform(kb, (out_dim,), jnp.float32, -bound, bound)
            return w, b

        k1, k2 = jax.random.split(key)
        self.fc1_w, self.fc1_b = linear_init(k1, hidden_dim, input_dim)   # [H, I]
        self.fc2_w, self.fc2_b = linear_init(k2, output_dim, hidden_dim)  # [O, H]

        # Cache pre-transposed, lane-dense (zero-padded to 128) weights/biases.
        hidden_pad = _round_up(hidden_dim, 128)
        out_pad = _round_up(output_dim, 128)
        self._w1t = (jnp.zeros((input_dim, hidden_pad), jnp.float32)
                     .at[:, :hidden_dim].set(self.fc1_w.T))
        self._b1r = (jnp.zeros((1, hidden_pad), jnp.float32)
                     .at[:, :hidden_dim].set(self.fc1_b[None, :]))
        self._w2t = (jnp.zeros((hidden_pad, out_pad), jnp.float32)
                     .at[:hidden_dim, :output_dim].set(self.fc2_w.T))
        self._b2r = (jnp.zeros((1, out_pad), jnp.float32)
                     .at[:, :output_dim].set(self.fc2_b[None, :]))

    def forward(self, x, *, train=False, key=None):
        """Matches SimpleModel.forward; train=False reproduces model.eval()."""
        if train:
            if key is None:
                key = jax.random.PRNGKey(0)
            return _forward_train(x, self._w1t, self._b1r, self._w2t, self._b2r,
                                  key, d_out=self.output_dim, p=self.p)
        return _forward_eval(x, self._w1t, self._b1r, self._w2t, self._b2r,
                             d_out=self.output_dim)

    def lastForward(self, x):
        """Matches SimpleModel.lastForward (no dropout)."""
        return _forward_eval(x, self._w1t, self._b1r, self._w2t, self._b2r,
                             d_out=self.output_dim)


if __name__ == "__main__":
    batch, input_dim, hidden_dim, output_dim = 8, 32, 16, 16

    key = jax.random.PRNGKey(0)
    kx, kparams, kdrop = jax.random.split(key, 3)
    x = jax.random.normal(kx, (batch, input_dim), dtype=jnp.float32)

    model = SimpleModelPallas(input_dim, output_dim, hidden_dim, p=0.6, key=kparams)

    # Eval-mode forward (dropout = identity), matching PyTorch model.eval().
    out = model.forward(x, train=False)
    jax.block_until_ready(out)

    # Pure-JAX reference check (eval mode).
    ref = (x @ model.fc1_w.T + model.fc1_b) @ model.fc2_w.T + model.fc2_b
    np.testing.assert_allclose(np.asarray(out), np.asarray(ref), rtol=1e-5, atol=1e-5)

    # lastForward is the same computation (no dropout).
    lf = model.lastForward(x)
    np.testing.assert_allclose(np.asarray(lf), np.asarray(ref), rtol=1e-5, atol=1e-5)

    # Train-mode forward (fused inverted-dropout epilogue) also executes.
    out_tr = model.forward(x, train=True, key=kdrop)
    jax.block_until_ready(out_tr)
    assert out_tr.shape == (batch, output_dim)

    print("KERNEL_OK")
</pallas_src>

<mosaic_0001>
module attributes {stable_mosaic.version = 11 : i64} {
  func.func @_mlp_eval_kernel(%arg0: memref<8x32xf32, #tpu.memory_space<vmem>>, %arg1: memref<32x128xf32, #tpu.memory_space<vmem>>, %arg2: memref<1x128xf32, #tpu.memory_space<vmem>>, %arg3: memref<128x128xf32, #tpu.memory_space<vmem>>, %arg4: memref<1x128xf32, #tpu.memory_space<vmem>>, %arg5: memref<8x128xf32, #tpu.memory_space<vmem>>) attributes {dimension_semantics = [], scalar_prefetch = 0 : i64, scratch_operands = 0 : i64, tpu.core_type = #tpu.core_type<tc>} {
    %c0 = arith.constant 0 : index
    %c0_0 = arith.constant 0 : index
    %0 = vector.load %arg0[%c0, %c0_0] : memref<8x32xf32, #tpu.memory_space<vmem>>, vector<8x32xf32>
    %c0_1 = arith.constant 0 : index
    %c0_2 = arith.constant 0 : index
    %1 = vector.load %arg1[%c0_1, %c0_2] : memref<32x128xf32, #tpu.memory_space<vmem>>, vector<32x128xf32>
    %cst = arith.constant dense<0.000000e+00> : vector<8x128xf32>
    %2 = tpu.matmul %0, %1, %cst {dimension_numbers = #tpu.dot_dimension_numbers<[1], [0], [0], [1], [0, 0, 1, 1], [], []>} : vector<8x32xf32>, vector<32x128xf32>, vector<8x128xf32> -> vector<8x128xf32>
    %c0_3 = arith.constant 0 : index
    %c0_4 = arith.constant 0 : index
    %3 = vector.load %arg2[%c0_3, %c0_4] : memref<1x128xf32, #tpu.memory_space<vmem>>, vector<1x128xf32>
    %4 = vector.broadcast %3 : vector<1x128xf32> to vector<8x128xf32>
    %5 = arith.addf %2, %4 : vector<8x128xf32>
    %c0_5 = arith.constant 0 : index
    %c0_6 = arith.constant 0 : index
    %6 = vector.load %arg3[%c0_5, %c0_6] : memref<128x128xf32, #tpu.memory_space<vmem>>, vector<128x128xf32>
    %cst_7 = arith.constant dense<0.000000e+00> : vector<8x128xf32>
    %7 = tpu.matmul %5, %6, %cst_7 {dimension_numbers = #tpu.dot_dimension_numbers<[1], [0], [0], [1], [0, 0, 1, 1], [], []>} : vector<8x128xf32>, vector<128x128xf32>, vector<8x128xf32> -> vector<8x128xf32>
    %c0_8 = arith.constant 0 : index
    %c0_9 = arith.constant 0 : index
    %8 = vector.load %arg4[%c0_8, %c0_9] : memref<1x128xf32, #tpu.memory_space<vmem>>, vector<1x128xf32>
    %9 = vector.broadcast %8 : vector<1x128xf32> to vector<8x128xf32>
    %10 = arith.addf %7, %9 : vector<8x128xf32>
    %c0_10 = arith.constant 0 : index
    %c0_11 = arith.constant 0 : index
    %11 = vector.load %arg5[%c0_10, %c0_11] : memref<8x128xf32, #tpu.memory_space<vmem>>, vector<8x128xf32>
    tpu.vector_store %arg5[%c0_10, %c0_11], %10 {strides = array<i32>} : memref<8x128xf32, #tpu.memory_space<vmem>>, vector<8x128xf32>,
    return
  }
}

</mosaic_0001>

<llo_original>
// kernel: _forward_eval.1
$region0: #{_forward_eval.1}
  #allocation0 [shape = 'u32[]', space=smem, size = 0x4, offset = 0x4, fixed_abs, tag = 'smem constant byte address 0x4 - core index']
  #allocation1 [shape = 'u32[144,128]{1,0:T(1,128)}', space=vmem, size = 0x12000, scoped, tag = 'internal scratch']
  %s0 = inlined_call_operand.hbm [shape: f32[8,32], index: 0, kind: input, shape index: {}]
  %s1 = inlined_call_operand.hbm [shape: f32[32,128], index: 1, kind: input, shape index: {}]
  %s2 = inlined_call_operand.vmem [shape: f32[1,128], index: 2, kind: input, shape index: {}]
  %s3 = inlined_call_operand.hbm [shape: f32[128,128], index: 3, kind: input, shape index: {}]
  %s4 = inlined_call_operand.vmem [shape: f32[1,128], index: 4, kind: input, shape index: {}]
  %s5 = inlined_call_operand.hbm [shape: f32[8,128], index: 5, kind: output, shape index: {}]
  %s6 = sld [smem:[#allocation0]]
  $region42: #{_forward_eval.1} parent=0
    _
  %s8 = ssub.s32 1, %s6
  %s9 = scalar_select 0, %s8, %s6
  $region1: #{_forward_eval.1} parent=0
    #allocation2 [shape = 'u8[4096]{0}', space=vmem, size = 0x1000, scoped, tag = 'input window, operand 0, single buffered']
    #allocation3 [shape = 's32[1]{0}', space=sflag, size = 0x4, scoped, tag = 'scoped memory for _forward_eval.1']
    #allocation4 [shape = 's32[1]{0}', space=sflag, size = 0x4, scoped, tag = 'scoped memory for _forward_eval.1']
    #allocation5 [shape = 'u8[16384]{0}', space=vmem, size = 0x4000, scoped, tag = 'input window, operand 1, single buffered']
    #allocation6 [shape = 's32[1]{0}', space=sflag, size = 0x4, scoped, tag = 'scoped memory for _forward_eval.1']
    #allocation7 [shape = 'u8[65536]{0}', space=vmem, size = 0x10000, scoped, tag = 'input window, operand 3, single buffered']
    #allocation8 [shape = 'u8[4096]{0}', space=vmem, size = 0x1000, scoped, tag = 'output window, operand 0, single buffered']
    %10 = vsyncpa [#allocation3], 0
    %11 = vsyncpa [#allocation6], 0
    %12 = vsyncpa [#allocation4], 0
    // Predicated region
    $region2: #{_forward_eval.1} parent=1 // pred_check
      _
    $region3: #{_forward_eval.1} parent=1 // pred_check_branch
      %14 = sbr.rel (0) target = $region5
    $region4: #{_forward_eval.1} parent=1 // pred_region
      %s16 = ssub.s32 128, 128
      %17 = vsyncadd [#allocation3], %s16
      %s19 = sshll.u32 [#allocation2], 4
      %s20 = int_to_ptr.vmem [resolvable:$true] %s19
      %22 = dma.hbm_to_vmem [thread:$0]  %s0, 128, %s20, [#allocation3]
    $region5: #{_forward_eval.1} parent=1 // pred_fallthru
      _
    // Predicated region
    $region6: #{_forward_eval.1} parent=1 // pred_check
      _
    $region7: #{_forward_eval.1} parent=1 // pred_check_branch
      %24 = sbr.rel (0) target = $region9
    $region8: #{_forward_eval.1} parent=1 // pred_region
      %s26 = ssub.s32 512, 512
      %27 = vsyncadd [#allocation6], %s26
      %s28 = sshll.u32 [#allocation5], 4
      %s29 = int_to_ptr.vmem [resolvable:$true] %s28
      %34 = dma.hbm_to_vmem [thread:$0]  %s1, 512, %s29, [#allocation6], 128, 128, 8
    $region9: #{_forward_eval.1} parent=1 // pred_fallthru
      _
    // Predicated region
    $region10: #{_forward_eval.1} parent=1 // pred_check
      _
    $region11: #{_forward_eval.1} parent=1 // pred_check_branch
      %36 = sbr.rel (0) target = $region13
    $region12: #{_forward_eval.1} parent=1 // pred_region
      _
    $region13: #{_forward_eval.1} parent=1 // pred_fallthru
      _
    // Predicated region
    $region14: #{_forward_eval.1} parent=1 // pred_check
      _
    $region15: #{_forward_eval.1} parent=1 // pred_check_branch
      %38 = sbr.rel (0) target = $region17
    $region16: #{_forward_eval.1} parent=1 // pred_region
      %s40 = ssub.s32 2048, 2048
      %41 = vsyncadd [#allocation6], %s40
      %s42 = sshll.u32 [#allocation7], 4
      %s43 = int_to_ptr.vmem [resolvable:$true] %s42
      %48 = dma.hbm_to_vmem [thread:$0]  %s3, 2048, %s43, [#allocation6], 128, 128, 8
    $region17: #{_forward_eval.1} parent=1 // pred_fallthru
      _
    // Predicated region
    $region18: #{_forward_eval.1} parent=1 // pred_check
      _
    $region19: #{_forward_eval.1} parent=1 // pred_check_branch
      %50 = sbr.rel (0) target = $region21
    $region20: #{_forward_eval.1} parent=1 // pred_region
      _
    $region21: #{_forward_eval.1} parent=1 // pred_fallthru
      _
    // Predicated region
    $region22: #{_forward_eval.1} parent=1 // pred_check
      _
    $region23: #{_forward_eval.1} parent=1 // pred_check_branch
      %52 = sbr.rel (0) target = $region25
    $region24: #{_forward_eval.1} parent=1 // pred_region
      %53 = dma.done [#allocation3], 128
    $region25: #{_forward_eval.1} parent=1 // pred_fallthru
      _
    // Predicated region
    $region26: #{_forward_eval.1} parent=1 // pred_check
      _
    $region27: #{_forward_eval.1} parent=1 // pred_check_branch
      %55 = sbr.rel (0) target = $region29
    $region28: #{_forward_eval.1} parent=1 // pred_region
      %56 = dma.done [#allocation6], 512
    $region29: #{_forward_eval.1} parent=1 // pred_fallthru
      _
    // Predicated region
    $region30: #{_forward_eval.1} parent=1 // pred_check
      _
    $region31: #{_forward_eval.1} parent=1 // pred_check_branch
      %58 = sbr.rel (0) target = $region33
    $region32: #{_forward_eval.1} parent=1 // pred_region
      %59 = dma.done [#allocation6], 2048
    $region33: #{_forward_eval.1} parent=1 // pred_fallthru
      _
    %v60 = vld [vmem:[#allocation2] sm:$0xff]
    %v61 = vld [vmem:[#allocation5] sm:$0xff]
    %v62 = vld [vmem:[#allocation5 + $0x8] sm:$0xff]
    %v63 = vld [vmem:[#allocation5 + $0x10] sm:$0xff]
    %v64 = vld [vmem:[#allocation5 + $0x18] sm:$0xff]
    %v65 = vld [vmem:[%s2] sm:$0x1]
    %v67 = vlaneseq
    %v68 = vshrl.u32 %v67, 7
    %v69 = vsub.s32 0, %v68
    %v70 = vrot.slane %v65, %v69
    %vm72 = vcmask 261120
    %v74 = vsel %vm72, %v60, 0
    %76 = vmatprep.subr.mxu0 0.0
    %77 = vmatpush1.msra.mxu0 %v61
    %78 = vmatprep.subr.mxu0 0.0
    %79 = vmatpush1.msra.mxu0 %v62
    %80 = vmatprep.subr.mxu0 0.0
    %81 = vmatpush1.msra.mxu0 %v63
    %82 = vmatprep.subr.mxu0 0.0
    %83 = vmatpush1.msra.mxu0 %v64
    %84 = vmatprep.subr.mxu0 0.0
    %85 = vmatpush1.msra.mxu0 0.0
    %86 = vmatprep.subr.mxu0 0.0
    %87 = vmatpush1.msra.mxu0 0.0
    %88 = vmatprep.subr.mxu0 0.0
    %89 = vmatpush1.msra.mxu0 0.0
    %90 = vmatprep.subr.mxu0 0.0
    %91 = vmatpush1.msra.mxu0 0.0
    %92 = vmatprep.subr.mxu0 0.0
    %93 = vmatpush1.msra.mxu0 0.0
    %94 = vmatprep.subr.mxu0 0.0
    %95 = vmatpush1.msra.mxu0 0.0
    %96 = vmatprep.subr.mxu0 0.0
    %97 = vmatpush1.msra.mxu0 0.0
    %98 = vmatprep.subr.mxu0 0.0
    %99 = vmatpush1.msra.mxu0 0.0
    %100 = vmatprep.subr.mxu0 0.0
    %101 = vmatpush1.msra.mxu0 0.0
    %102 = vmatprep.subr.mxu0 0.0
    %103 = vmatpush1.msra.mxu0 0.0
    %104 = vmatprep.subr.mxu0 0.0
    %105 = vmatpush1.msra.mxu0 0.0
    %106 = vmatprep.subr.mxu0 0.0
    %107 = vmatpush1.msra.mxu0 0.0
    %108 = vmatprep.subr.mxu0 0.0
    %109 = vmatpush1.msra.mxu0 0.0
    %110 = vmatprep.subr.mxu0 0.0
    %111 = vmatpush1.msra.mxu0 0.0
    %112 = vmatprep.subr.mxu0 0.0
    %113 = vmatpush1.msra.mxu0 0.0
    %114 = vmatprep.subr.mxu0 0.0
    %115 = vmatpush1.msra.mxu0 0.0
    %116 = vmatprep.subr.mxu0 0.0
    %117 = vmatpush1.msra.mxu0 0.0
    %118 = vmatprep.subr.mxu0 0.0
    %119 = vmatpush1.msra.mxu0 0.0
    %120 = vmatprep.subr.mxu0 0.0
    %121 = vmatpush1.msra.mxu0 0.0
    %122 = vmatprep.subr.mxu0 0.0
    %123 = vmatpush1.msra.mxu0 0.0
    %124 = vmatprep.subr.mxu0 0.0
    %125 = vmatpush1.msra.mxu0 0.0
    %126 = vmatprep.subr.mxu0 0.0
    %127 = vmatpush1.msra.mxu0 0.0
    %128 = vmatprep.subr.mxu0 0.0
    %129 = vmatpush1.msra.mxu0 0.0
    %130 = vmatprep.subr.mxu0 0.0
    %131 = vmatpush1.msra.mxu0 0.0
    %132 = vmatprep.subr.mxu0 0.0
    %133 = vmatpush1.msra.mxu0 0.0
    %134 = vmatprep.subr.mxu0 0.0
    %135 = vmatpush1.msra.mxu0 0.0
    %136 = vmatprep.subr.mxu0 0.0
    %137 = vmatpush1.msra.mxu0 0.0
    %138 = vmatprep.subr.mxu0 0.0
    %139 = vmatpush1.msra.mxu0 0.0
    %140 = vmatprep.mubr.f32.mxu0 0.0
    %141 = vmatmul.mubr.f32.gmra.mrb[0].mxu0 %v74
    %v142 = vpop.f32.mrb[0].mxu0
    %v143 = vadd.f32 %v70, %v142
    %v144 = vpop.f32.mrb[0].mxu0
    %145 = vdwg.mxu0
    %v146 = vld [vmem:[#allocation7] sm:$0xff]
    %v147 = vld [vmem:[#allocation7 + $0x8] sm:$0xff]
    %v148 = vld [vmem:[#allocation7 + $0x10] sm:$0xff]
    %v149 = vld [vmem:[#allocation7 + $0x18] sm:$0xff]
    %v150 = vld [vmem:[#allocation7 + $0x20] sm:$0xff]
    %v151 = vld [vmem:[#allocation7 + $0x28] sm:$0xff]
    %v152 = vld [vmem:[#allocation7 + $0x30] sm:$0xff]
    %v153 = vld [vmem:[#allocation7 + $0x38] sm:$0xff]
    %v154 = vld [vmem:[#allocation7 + $0x40] sm:$0xff]
    %v155 = vld [vmem:[#allocation7 + $0x48] sm:$0xff]
    %v156 = vld [vmem:[#allocation7 + $0x50] sm:$0xff]
    %v157 = vld [vmem:[#allocation7 + $0x58] sm:$0xff]
    %v158 = vld [vmem:[#allocation7 + $0x60] sm:$0xff]
    %v159 = vld [vmem:[#allocation7 + $0x68] sm:$0xff]
    %v160 = vld [vmem:[#allocation7 + $0x70] sm:$0xff]
    %v161 = vld [vmem:[#allocation7 + $0x78] sm:$0xff]
    %v162 = vld [vmem:[%s4] sm:$0x1]
    %v164 = vlaneseq
    %v165 = vshrl.u32 %v164, 7
    %v166 = vsub.s32 0, %v165
    %v167 = vrot.slane %v162, %v166
    %169 = vmatprep.subr.mxu0 0.0
    %170 = vmatpush1.msra.mxu0 %v146
    %171 = vmatprep.subr.mxu0 0.0
    %172 = vmatpush1.msra.mxu0 %v147
    %173 = vmatprep.subr.mxu0 0.0
    %174 = vmatpush1.msra.mxu0 %v148
    %175 = vmatprep.subr.mxu0 0.0
    %176 = vmatpush1.msra.mxu0 %v149
    %177 = vmatprep.subr.mxu0 0.0
    %178 = vmatpush1.msra.mxu0 %v150
    %179 = vmatprep.subr.mxu0 0.0
    %180 = vmatpush1.msra.mxu0 %v151
    %181 = vmatprep.subr.mxu0 0.0
    %182 = vmatpush1.msra.mxu0 %v152
    %183 = vmatprep.subr.mxu0 0.0
    %184 = vmatpush1.msra.mxu0 %v153
    %185 = vmatprep.subr.mxu0 0.0
    %186 = vmatpush1.msra.mxu0 %v154
    %187 = vmatprep.subr.mxu0 0.0
    %188 = vmatpush1.msra.mxu0 %v155
    %189 = vmatprep.subr.mxu0 0.0
    %190 = vmatpush1.msra.mxu0 %v156
    %191 = vmatprep.subr.mxu0 0.0
    %192 = vmatpush1.msra.mxu0 %v157
    %193 = vmatprep.subr.mxu0 0.0
    %194 = vmatpush1.msra.mxu0 %v158
    %195 = vmatprep.subr.mxu0 0.0
    %196 = vmatpush1.msra.mxu0 %v159
    %197 = vmatprep.subr.mxu0 0.0
    %198 = vmatpush1.msra.mxu0 %v160
    %199 = vmatprep.subr.mxu0 0.0
    %200 = vmatpush1.msra.mxu0 %v161
    %201 = vmatprep.subr.mxu0 0.0
    %202 = vmatpush1.msra.mxu0 0.0
    %203 = vmatprep.subr.mxu0 0.0
    %204 = vmatpush1.msra.mxu0 0.0
    %205 = vmatprep.subr.mxu0 0.0
    %206 = vmatpush1.msra.mxu0 0.0
    %207 = vmatprep.subr.mxu0 0.0
    %208 = vmatpush1.msra.mxu0 0.0
    %209 = vmatprep.subr.mxu0 0.0
    %210 = vmatpush1.msra.mxu0 0.0
    %211 = vmatprep.subr.mxu0 0.0
    %212 = vmatpush1.msra.mxu0 0.0
    %213 = vmatprep.subr.mxu0 0.0
    %214 = vmatpush1.msra.mxu0 0.0
    %215 = vmatprep.subr.mxu0 0.0
    %216 = vmatpush1.msra.mxu0 0.0
    %217 = vmatprep.subr.mxu0 0.0
    %218 = vmatpush1.msra.mxu0 0.0
    %219 = vmatprep.subr.mxu0 0.0
    %220 = vmatpush1.msra.mxu0 0.0
    %221 = vmatprep.subr.mxu0 0.0
    %222 = vmatpush1.msra.mxu0 0.0
    %223 = vmatprep.subr.mxu0 0.0
    %224 = vmatpush1.msra.mxu0 0.0
    %225 = vmatprep.subr.mxu0 0.0
    %226 = vmatpush1.msra.mxu0 0.0
    %227 = vmatprep.subr.mxu0 0.0
    %228 = vmatpush1.msra.mxu0 0.0
    %229 = vmatprep.subr.mxu0 0.0
    %230 = vmatpush1.msra.mxu0 0.0
    %231 = vmatprep.subr.mxu0 0.0
    %232 = vmatpush1.msra.mxu0 0.0
    %233 = vmatprep.mubr.f32.mxu0 0.0
    %234 = vmatmul.mubr.f32.gmra.mrb[0].mxu0 %v143
    %v235 = vpop.f32.mrb[0].mxu0
    %v236 = vadd.f32 %v167, %v235
    %v237 = vpop.f32.mrb[0].mxu0
    %238 = vdwg.mxu0
    %239 = vst [vmem:[#allocation8] sm:$0xff] %v236
    // Predicated region
    $region34: #{_forward_eval.1} parent=1 // pred_check
      _
    $region35: #{_forward_eval.1} parent=1 // pred_check_branch
      %241 = sbr.rel (0) target = $region37
    $region36: #{_forward_eval.1} parent=1 // pred_region
      %s243 = ssub.s32 128, 128
      %244 = vsyncadd [#allocation4], %s243
      %s246 = sshll.u32 [#allocation8], 4
      %s247 = int_to_ptr.vmem [resolvable:$true] %s246
      %249 = dma.vmem_to_hbm [thread:$0]  %s247, 128, %s5, [#allocation4]
    $region37: #{_forward_eval.1} parent=1 // pred_fallthru
      _
    // Predicated region
    $region38: #{_forward_eval.1} parent=1 // pred_check
      _
    $region39: #{_forward_eval.1} parent=1 // pred_check_branch
      %251 = sbr.rel (0) target = $region41
    $region40: #{_forward_eval.1} parent=1 // pred_region
      %252 = dma.done [#allocation4], 128
    $region41: #{_forward_eval.1} parent=1 // pred_fallthru
      _
    %253 = vsyncpa [#allocation3], 1
    %254 = vsyncpa [#allocation6], 1
    %255 = vsyncpa [#allocation4], 1

</llo_original>
